<compile_context>
chip_gen: v7x
topology: tpu7x:2x2x1
jax: 0.10.0
libtpu: 0.0.40
codegen_flags: <defaults>
</compile_context>

<pallas_src>
import jax
import jax.numpy as jnp
from jax.experimental import pallas as pl
from jax.experimental.pallas import tpu as pltpu

CLIP_MU = (0.48145466, 0.4578275, 0.40821073)
CLIP_SIGMA = (0.26862954, 0.26130258, 0.27577711)


def _make_kernel(C, scales, offsets, TR):
    """Kernel over a (TR, TN) tile of the (B*C, H*W) slab.

    Per-channel constants are baked in; the channel of row r is r % C, so the
    per-row scale/offset are reconstructed in-register with a broadcasted_iota
    plus C-1 selects (free VPU work in a memory-bound kernel).
    """
    scales = tuple(float(s) for s in scales)
    offsets = tuple(float(o) for o in offsets)

    def kernel(x_ref, o_ref):
        x = x_ref[...].astype(jnp.float32)          # u8/bf16/f32 -> f32 in-kernel
        rows = (pl.program_id(0) * TR
                + jax.lax.broadcasted_iota(jnp.int32, (TR, 1), 0))
        ch = rows % C
        scale = jnp.full((TR, 1), scales[0], jnp.float32)
        offset = jnp.full((TR, 1), offsets[0], jnp.float32)
        for c in range(1, C):
            scale = jnp.where(ch == c, scales[c], scale)
            offset = jnp.where(ch == c, offsets[c], offset)
        o_ref[...] = (x * scale + offset).astype(o_ref.dtype)

    return kernel


def _largest_div_tile(n, cap):
    """Largest multiple-of-128 divisor of n that is <= cap, or None."""
    t = (min(cap, n) // 128) * 128
    while t >= 128:
        if n % t == 0:
            return t
        t -= 128
    return None


def _pick_tiles(R, N, in_bytes, out_bytes, target_tile_bytes=2 * 1024 * 1024):
    # Row (sublane-packed) tile: full extent when modest (always layout-legal),
    # else a multiple of 32 (legal for u8 (32,128) / bf16 (16,128) packed
    # tiles), preferring exact divisors of R.
    if R <= 1024:
        TR = R
    else:
        TR = 1024
        while TR >= 32 and R % TR:
            TR -= 32
        TR = max(TR, 32)

    if N <= 128:
        return TR, N                      # tiny spatial extent: one lane tile

    # Lane tile: multiple of 128, capped so one in+out tile is ~2 MiB
    # (~8 MiB resident with double buffering), preferring exact divisors of N
    # so every store is an unmasked full-lane vst.
    per_col = TR * (in_bytes + out_bytes)
    cap = max(128, (target_tile_bytes // per_col) // 128 * 128)
    TN = _largest_div_tile(N, cap)
    if TN is None:
        rounded = ((N + 127) // 128) * 128
        TN = min(cap, rounded)
        if TN >= rounded:
            TN = N                        # whole axis as one full-extent tile

    # Keep >= 2 grid steps along a "parallel" axis so v7x's two TensorCores
    # both get work (a no-op on single-TC v5e/v6e).
    if TR == R and TN >= N and N >= 256:
        half = ((pl.cdiv(N, 2) + 127) // 128) * 128
        d = _largest_div_tile(N, half)
        TN = d if d is not None else half
    return TR, TN


def clip_encoder_forward(x_nhwc, mu=CLIP_MU, sigma=CLIP_SIGMA,
                         out_dtype=jnp.bfloat16):
    """(B, H, W, C) pixel values in [0, 255] -> preprocessed (B, C, H, W) tensor.

    Implements ClipEncoder.forward up to (but not including) the pretrained
    CLIP RN50 image encoder.
    """
    B, H, W, C = x_nhwc.shape
    assert len(mu) == C and len(sigma) == C

    # permute(0, 3, 1, 2) in the *source* dtype (no up-front f32 cast):
    # the layout change the CLIP conv stem needs, left to XLA as one pass.
    x_nchw = jnp.transpose(x_nhwc, (0, 3, 1, 2))

    R, N = B * C, H * W
    x2d = x_nchw.reshape(R, N)            # lane-dense 2-D slab

    in_bytes = x2d.dtype.itemsize
    out_bytes = jnp.dtype(out_dtype).itemsize
    TR, TN = _pick_tiles(R, N, in_bytes, out_bytes)
    grid = (pl.cdiv(R, TR), pl.cdiv(N, TN))

    # Fold /255.0 and Normalize(mu, sigma) into one FMA.
    scales = tuple(1.0 / (255.0 * float(s)) for s in sigma)
    offsets = tuple(-float(m) / float(s) for m, s in zip(mu, sigma))
    kernel = _make_kernel(C, scales, offsets, TR)

    cost = pl.CostEstimate(
        flops=2 * R * N,
        transcendentals=0,
        bytes_accessed=R * N * (in_bytes + out_bytes),
    )

    out2d = pl.pallas_call(
        kernel,
        out_shape=jax.ShapeDtypeStruct((R, N), out_dtype),
        grid=grid,
        in_specs=[pl.BlockSpec((TR, TN), lambda r, n: (r, n))],
        out_specs=pl.BlockSpec((TR, TN), lambda r, n: (r, n)),
        compiler_params=pltpu.CompilerParams(
            dimension_semantics=("parallel", "parallel"),
            # Explicit headroom; tiles are budget-capped at ~2 MiB so this is
            # comfortably within every generation's scoped/physical VMEM.
            vmem_limit_bytes=32 * 1024 * 1024,
        ),
        cost_estimate=cost,
    )(x2d)

    x_pre = out2d.reshape(B, C, H, W)

    # TODO(synk): clip_model_encoder.encode_image (pretrained CLIP RN50: conv
    # stem, 4 ResNet stages, attention pooling -> (B, emb_dim)) has no
    # self-contained Pallas equivalent without the pretrained weights.
    return x_pre


def clip_preprocess_ref(x_nhwc, mu=CLIP_MU, sigma=CLIP_SIGMA):
    """Pure-JAX reference mirroring the PyTorch preprocessing exactly."""
    x = jnp.transpose(x_nhwc.astype(jnp.float32), (0, 3, 1, 2)) / 255.0
    mu = jnp.asarray(mu, jnp.float32).reshape(1, -1, 1, 1)
    sigma = jnp.asarray(sigma, jnp.float32).reshape(1, -1, 1, 1)
    return (x - mu) / sigma


if __name__ == "__main__":
    # Small CLIP-style image batch (real model uses 224 x 224 x 3 uint8 pixels).
    B, H, W, C = 2, 16, 16, 3

    key = jax.random.PRNGKey(0)
    x = jax.random.randint(key, (B, H, W, C), 0, 256, dtype=jnp.int32)
    x = x.astype(jnp.uint8)

    out = jax.jit(clip_encoder_forward)(x)
    out = jax.block_until_ready(out)

    ref = clip_preprocess_ref(x)
    assert out.shape == (B, C, H, W)
    assert out.dtype == jnp.bfloat16
    assert jnp.allclose(out.astype(jnp.float32), ref, atol=2e-2, rtol=2e-2)

    print("KERNEL_OK")
</pallas_src>

<mosaic_0001>
module attributes {stable_mosaic.version = 11 : i64} {
  func.func @kernel(%arg0: i32, %arg1: i32, %arg2: memref<6x128xi8, #tpu.memory_space<vmem>>, %arg3: memref<6x128xbf16, #tpu.memory_space<vmem>>) attributes {dimension_semantics = [#tpu.dimension_semantics<parallel>, #tpu.dimension_semantics<parallel>], iteration_bounds = array<i64: 1, 2>, scalar_prefetch = 0 : i64, scratch_operands = 0 : i64, tpu.core_type = #tpu.core_type<tc>, window_params = [{transform_indices = @transform_0, window_bounds = array<i64: 6, 128>}, {transform_indices = @transform_1, window_bounds = array<i64: 6, 128>}]} {
    %c0 = arith.constant 0 : index
    %c0_0 = arith.constant 0 : index
    %0 = vector.load %arg2[%c0, %c0_0] : memref<6x128xi8, #tpu.memory_space<vmem>>, vector<6x128xi8>
    %1 = arith.uitofp %0 : vector<6x128xi8> to vector<6x128xf32>
    %c6_i32 = arith.constant 6 : i32
    %2 = arith.muli %arg0, %c6_i32 : i32
    %3 = tpu.iota {dimensions = array<i32: 0>} : vector<6x1xi32>
    %4 = vector.broadcast %2 : i32 to vector<6x1xi32>
    %5 = arith.addi %4, %3 : vector<6x1xi32>
    %c3_i32 = arith.constant 3 : i32
    %c0_i32 = arith.constant 0 : i32
    %6 = arith.cmpi eq, %c3_i32, %c0_i32 : i32
    %c1_i32 = arith.constant 1 : i32
    %7 = arith.select %6, %c1_i32, %c3_i32 : i32
    %8 = vector.broadcast %7 : i32 to vector<6x1xi32>
    %9 = arith.remsi %5, %8 : vector<6x1xi32>
    %c0_i32_1 = arith.constant 0 : i32
    %10 = vector.broadcast %c0_i32_1 : i32 to vector<6x1xi32>
    %11 = arith.cmpi ne, %9, %10 : vector<6x1xi32>
    %c0_i32_2 = arith.constant 0 : i32
    %12 = vector.broadcast %c0_i32_2 : i32 to vector<6x1xi32>
    %13 = arith.cmpi slt, %9, %12 : vector<6x1xi32>
    %c0_i32_3 = arith.constant 0 : i32
    %14 = arith.cmpi slt, %7, %c0_i32_3 : i32
    %15 = vector.broadcast %14 : i1 to vector<6x1xi1>
    %16 = vector.broadcast %15 : vector<6x1xi1> to vector<6x1xi1>
    %17 = arith.xori %13, %16 : vector<6x1xi1>
    %18 = arith.andi %17, %11 : vector<6x1xi1>
    %19 = vector.broadcast %7 : i32 to vector<6x1xi32>
    %20 = arith.addi %9, %19 : vector<6x1xi32>
    %21 = arith.select %18, %20, %9 : vector<6x1xi1>, vector<6x1xi32>
    %cst = arith.constant 0.0145984264 : f32
    %22 = vector.broadcast %cst : f32 to vector<6x1xf32>
    %cst_4 = arith.constant -1.79226255 : f32
    %23 = vector.broadcast %cst_4 : f32 to vector<6x1xf32>
    %c1_i32_5 = arith.constant 1 : i32
    %24 = vector.broadcast %c1_i32_5 : i32 to vector<6x1xi32>
    %25 = arith.cmpi eq, %21, %24 : vector<6x1xi32>
    %cst_6 = arith.constant 0.0150077688 : f32
    %26 = vector.broadcast %cst_6 : f32 to vector<6x1xf32>
    %27 = arith.select %25, %26, %22 : vector<6x1xi1>, vector<6x1xf32>
    %c1_i32_7 = arith.constant 1 : i32
    %28 = vector.broadcast %c1_i32_7 : i32 to vector<6x1xi32>
    %29 = arith.cmpi eq, %21, %28 : vector<6x1xi32>
    %cst_8 = arith.constant -1.75209713 : f32
    %30 = vector.broadcast %cst_8 : f32 to vector<6x1xf32>
    %31 = arith.select %29, %30, %23 : vector<6x1xi1>, vector<6x1xf32>
    %c2_i32 = arith.constant 2 : i32
    %32 = vector.broadcast %c2_i32 : i32 to vector<6x1xi32>
    %33 = arith.cmpi eq, %21, %32 : vector<6x1xi32>
    %cst_9 = arith.constant 0.0142200654 : f32
    %34 = vector.broadcast %cst_9 : f32 to vector<6x1xf32>
    %35 = arith.select %33, %34, %27 : vector<6x1xi1>, vector<6x1xf32>
    %c2_i32_10 = arith.constant 2 : i32
    %36 = vector.broadcast %c2_i32_10 : i32 to vector<6x1xi32>
    %37 = arith.cmpi eq, %21, %36 : vector<6x1xi32>
    %cst_11 = arith.constant -1.48021972 : f32
    %38 = vector.broadcast %cst_11 : f32 to vector<6x1xf32>
    %39 = arith.select %37, %38, %31 : vector<6x1xi1>, vector<6x1xf32>
    %40 = vector.broadcast %35 : vector<6x1xf32> to vector<6x128xf32>
    %41 = arith.mulf %1, %40 : vector<6x128xf32>
    %42 = vector.broadcast %39 : vector<6x1xf32> to vector<6x128xf32>
    %43 = arith.addf %41, %42 : vector<6x128xf32>
    %44 = arith.truncf %43 : vector<6x128xf32> to vector<6x128xbf16>
    %c0_12 = arith.constant 0 : index
    %c0_13 = arith.constant 0 : index
    %45 = vector.load %arg3[%c0_12, %c0_13] : memref<6x128xbf16, #tpu.memory_space<vmem>>, vector<6x128xbf16>
    tpu.vector_store %arg3[%c0_12, %c0_13], %44 {strides = array<i32>} : memref<6x128xbf16, #tpu.memory_space<vmem>>, vector<6x128xbf16>,
    return
  }
  func.func @transform_0(%arg0: i32, %arg1: i32) -> (i32, i32) {
    %c0_i32 = arith.constant 0 : i32
    return %arg0, %arg1 : i32, i32
  }
  func.func @transform_1(%arg0: i32, %arg1: i32) -> (i32, i32) {
    %c0_i32 = arith.constant 0 : i32
    return %arg0, %arg1 : i32, i32
  }
}

</mosaic_0001>

<llo_original>
// kernel: clip_encoder_forward.1
$region0: #{clip_encoder_forward.1}
  #allocation0 [shape = 'u32[]', space=smem, size = 0x4, offset = 0x4, fixed_abs, tag = 'smem constant byte address 0x4 - core index']
  #allocation1 [shape = 'u32[144,128]{1,0:T(1,128)}', space=vmem, size = 0x12000, scoped, tag = 'internal scratch']
  %s0 = inlined_call_operand.vmem [shape: u8[6,256], index: 0, kind: input, shape index: {}]
  %s1 = inlined_call_operand.vmem [shape: bf16[6,256], index: 1, kind: output, shape index: {}]
  %s2 = sld [smem:[#allocation0]]
  $region37: #{clip_encoder_forward.1} parent=0
    _
  %s4 = ssub.s32 1, %s2
  %s5 = scalar_select 0, %s4, %s2
  loop: start=0, step=1, limit=4
  $region2: #{clip_encoder_forward.1} parent=0 // loop_pre_header
    _
  $region3: #{clip_encoder_forward.1} parent=0 // loop_header
    %s7 = sphi 0, %s11
    %p8 = scmp.ge.s32.totalorder %s7, 4
    %s14 = sphi 0, %s26
    %s15 = sphi 0, %s22
    %s16 = sphi 0, %s14
    %s17 = sphi 0, %s15
    %s18 = sphi 0, %s16
    %s19 = sphi 0, %s17
    %s31 = sphi 0, %s33
    %s34 = sphi 0, %s31
    %s35 = sphi 0, %s34
    %s51 = sphi 0, %s35
    %s59 = sphi 0, %s61
    %s62 = sphi 0, %s59
    %s63 = sphi 0, %s62
    %s79 = sphi 0, %s63
  $region4: #{clip_encoder_forward.1} parent=0 // loop_header_branch
    %10 = sbr.rel (%p8) target = $region8
  $region5: #{clip_encoder_forward.1} parent=0 // loop_body
    %s12 = ssub.s32 %s7, 1
    %s13 = ssub.s32 %s7, 2
    %s20 = sadd.s32 1, %s15
    %p21 = scmp.ge.s32.totalorder %s20, 2
    %s22 = scalar_select %p21, 0, %s20
    %s23 = sadd.s32 1, %s14
    %s24 = scalar_select %p21, %s23, %s14
    %p25 = scmp.ge.s32.totalorder %s24, 1
    %s26 = scalar_select %p25, 0, %s24
    %s27 = ssub.s32 %s14, %s26
    %s28 = ssub.s32 %s15, %s22
    %s29 = sor.u32 %s27, %s28
    %p30 = scmp.eq.s32.totalorder %s29, 0
    %s32 = sadd.s32 %s31, 1
    %s33 = scalar_select %p30, %s31, %s32
    %p36 = pneg %p30
    %p37 = scmp.eq.s32.totalorder %s7, 1
    %p38 = por %p36, %p37
    %p39 = scmp.ne.s32.totalorder %s31, %s34
    %p40 = scmp.eq.s32.totalorder %s7, 0
    %p41 = por %p39, %p40
    %p42 = scmp.ne.s32.totalorder %s31, %s34
    %p43 = scmp.eq.s32.totalorder %s12, 1
    %p44 = por %p42, %p43
    %p45 = scmp.ne.s32.totalorder %s34, %s35
    %p46 = scmp.eq.s32.totalorder %s12, 0
    %p47 = por %p45, %p46
    %p48 = scmp.ne.s32.totalorder %s34, %s35
    %p49 = scmp.eq.s32.totalorder %s13, 1
    %p50 = por %p48, %p49
    %p52 = scmp.ne.s32.totalorder %s35, %s51
    %p53 = scmp.eq.s32.totalorder %s13, 0
    %p54 = por %p52, %p53
    %s55 = ssub.s32 %s14, %s26
    %s56 = ssub.s32 %s15, %s22
    %s57 = sor.u32 %s55, %s56
    %p58 = scmp.eq.s32.totalorder %s57, 0
    %s60 = sadd.s32 %s59, 1
    %s61 = scalar_select %p58, %s59, %s60
    %p64 = pneg %p58
    %p65 = scmp.eq.s32.totalorder %s7, 1
    %p66 = por %p64, %p65
    %p67 = scmp.ne.s32.totalorder %s59, %s62
    %p68 = scmp.eq.s32.totalorder %s7, 0
    %p69 = por %p67, %p68
    %p70 = scmp.ne.s32.totalorder %s59, %s62
    %p71 = scmp.eq.s32.totalorder %s12, 1
    %p72 = por %p70, %p71
    %p73 = scmp.ne.s32.totalorder %s62, %s63
    %p74 = scmp.eq.s32.totalorder %s12, 0
    %p75 = por %p73, %p74
    %p76 = scmp.ne.s32.totalorder %s62, %s63
    %p77 = scmp.eq.s32.totalorder %s13, 1
    %p78 = por %p76, %p77
    %p80 = scmp.ne.s32.totalorder %s63, %s79
    %p81 = scmp.eq.s32.totalorder %s13, 0
    %p82 = por %p80, %p81
    %p83 = scmp.le.s32.totalorder 1, %s7
    %p84 = scmp.lt.s32.totalorder %s7, 3
    %p85 = pnand %p83, %p84
    %p86 = pneg %p85
    // Predicated region
    $region9: #{clip_encoder_forward.1} parent=5 // pred_check
      _
    $region10: #{clip_encoder_forward.1} parent=5 // pred_check_branch
      %88 = sbr.rel (%p85) target = $region12
    $region11: #{clip_encoder_forward.1} parent=5 // pred_region
      %s89 = ssub.s32 %s7, 1
    $region12: #{clip_encoder_forward.1} parent=5 // pred_fallthru
      _
    %p90 = scmp.lt.s32.totalorder %s7, 2
    // Predicated region
    $region13: #{clip_encoder_forward.1} parent=5 // pred_check
      %p91 = pneg %p90
    $region14: #{clip_encoder_forward.1} parent=5 // pred_check_branch
      %93 = sbr.rel (%p91) target = $region16
    $region15: #{clip_encoder_forward.1} parent=5 // pred_region
      // Predicated region
      $region17: #{clip_encoder_forward.1} parent=15 // pred_check
        %p94 = pneg %p41
      $region18: #{clip_encoder_forward.1} parent=15 // pred_check_branch
        %96 = sbr.rel (%p94) target = $region20
      $region19: #{clip_encoder_forward.1} parent=15 // pred_region
        %p97 = scmp.lt.s32.totalorder %s14, 0
        %s98 = scalar_select %p97, %s14, 0
        %p99 = scmp.lt.s32.totalorder %s15, 1
        %s100 = scalar_select %p99, %s15, 1
        %s101 = smul.addr %s98, 2
        %s102 = sadd.s32 %s100, %s101
        %s103 = smul.addr %s102, 2
        %s104 = scalar_lea.vmem %s0, %s103
      $region20: #{clip_encoder_forward.1} parent=15 // pred_fallthru
        _
    $region16: #{clip_encoder_forward.1} parent=5 // pred_fallthru
      _
    %p105 = scmp.le.s32.totalorder 1, %s7
    %p106 = scmp.lt.s32.totalorder %s7, 3
    %p107 = pnand %p105, %p106
    %p108 = pneg %p107
    // Predicated region
    $region21: #{clip_encoder_forward.1} parent=5 // pred_check
      _
    $region22: #{clip_encoder_forward.1} parent=5 // pred_check_branch
      %110 = sbr.rel (%p107) target = $region24
    $region23: #{clip_encoder_forward.1} parent=5 // pred_region
      %s111 = ssub.s32 %s7, 1
      %p112 = scmp.lt.s32.totalorder %s16, 0
      %s113 = scalar_select %p112, %s16, 0
      %p114 = scmp.lt.s32.totalorder %s17, 1
      %s115 = scalar_select %p114, %s17, 1
      %s116 = smul.addr %s113, 2
      %s117 = sadd.s32 %s115, %s116
      %s118 = smul.addr %s117, 2
      %s119 = scalar_lea.vmem %s0, %s118
      %p120 = pneg %p47
      %p121 = pneg %p44
      %p122 = pneg %p75
      %p123 = pneg %p72
      %p124 = scmp.lt.s32.totalorder %s16, 0
      %s125 = scalar_select %p124, %s16, 0
      %p126 = scmp.lt.s32.totalorder %s17, 1
      %s127 = scalar_select %p126, %s17, 1
      %s128 = smul.addr %s125, 2
      %s129 = sadd.s32 %s127, %s128
      %s130 = smul.addr %s129, 4
      %s131 = scalar_lea.vmem %s1, %s130
      %p132 = scmp.lt.s32.totalorder %s16, 0
      %s133 = scalar_select %p132, %s16, 0
      %p134 = scmp.lt.s32.totalorder %s17, 1
      %s135 = scalar_select %p134, %s17, 1
      %s136 = smul.addr %s133, 2
      %s137 = sadd.s32 %s135, %s136
      %s138 = smul.addr %s137, 2
      %s139 = scalar_lea.vmem %s0, %s138
      %p140 = scmp.lt.s32.totalorder %s16, 0
      %s141 = scalar_select %p140, %s16, 0
      %p142 = scmp.lt.s32.totalorder %s17, 1
      %s143 = scalar_select %p142, %s17, 1
      %s144 = smul.addr %s141, 2
      %s145 = sadd.s32 %s143, %s144
      %s146 = smul.addr %s145, 4
      %s147 = scalar_lea.vmem %s1, %s146
      %v148 = vld [vmem:[%s139] sm:$0x3]
      %v149 = vunpack.c.0.s8 %v148
      %v150 = vand.u32 %v149, 255
      %v151 = vcvt.s32.f32 %v150
      %s152 = smul.u32 %s16, 6
      %v153 = vlaneseq
      %v154 = vshrl.u32 %v153, 7
      %v155 = vstv %s152
      %v156 = vadd.s32 %v155, %v154
      %vm157 = vcmp.lt.s32.totalorder %v156, 0
      %v158 = vsub.s32 0, %v156
      %v159 = vsel %vm157, %v158, %v156
      %v160 = vmul.u32.u64.compose %v159, 2863311531
      %v161 = vextract.low.u32 %v160
      %v162 = vextract.high.u32 %v160
      %v163 = vshrl.u32 %v162, 1
      %v164 = vmul.u32 %v163, 3
      %v165 = vsub.s32 %v159, %v164
      %v166 = vsub.s32 0, %v165
      %v167 = vsel %vm157, %v166, %v165
      %vm168 = vcmp.ne.s32.totalorder %v167, 0
      %vm169 = vcmp.lt.s32.totalorder %v167, 0
      %vm170 = vmand %vm169, %vm168
      %v171 = vadd.s32 %v167, 3
      %v172 = vsel %vm170, %v171, %v167
      %vm173 = vcmp.eq.s32.totalorder %v172, 1
      %v174 = vsel %vm173, 0.015007769, 0.014598426
      %v175 = vsel %vm173, -1.7520971, -1.7922626
      %vm176 = vcmp.eq.s32.totalorder %v172, 2
      %v177 = vsel %vm176, 0.014220065, %v174
      %v178 = vsel %vm176, -1.4802197, %v175
      %v179 = vmul.f32 %v151, %v177
      %v180 = vadd.f32 %v179, %v178
      %v181 = vpack.c.bf16 %v180, %v180
      %182 = vst [vmem:[%s147] sm:$0x7] %v181
      %p183 = scmp.lt.s32.totalorder %s16, 0
      %s184 = scalar_select %p183, %s16, 0
      %p185 = scmp.lt.s32.totalorder %s17, 1
      %s186 = scalar_select %p185, %s17, 1
      %s187 = smul.addr %s184, 2
      %s188 = sadd.s32 %s186, %s187
      %s189 = smul.addr %s188, 4
      %s190 = scalar_lea.vmem %s1, %s189
      // Predicated region
      $region25: #{clip_encoder_forward.1} parent=23 // pred_check
        %p191 = pneg %p72
      $region26: #{clip_encoder_forward.1} parent=23 // pred_check_branch
        %193 = sbr.rel (%p191) target = $region28
      $region27: #{clip_encoder_forward.1} parent=23 // pred_region
        _
      $region28: #{clip_encoder_forward.1} parent=23 // pred_fallthru
        _
    $region24: #{clip_encoder_forward.1} parent=5 // pred_fallthru
      _
    %p194 = scmp.le.s32.totalorder 2, %s7
    // Predicated region
    $region29: #{clip_encoder_forward.1} parent=5 // pred_check
      %p195 = pneg %p194
    $region30: #{clip_encoder_forward.1} parent=5 // pred_check_branch
      %197 = sbr.rel (%p195) target = $region32
    $region31: #{clip_encoder_forward.1} parent=5 // pred_region
      %s198 = ssub.s32 %s7, 2
      // Predicated region
      $region33: #{clip_encoder_forward.1} parent=31 // pred_check
        %p199 = pneg %p78
      $region34: #{clip_encoder_forward.1} parent=31 // pred_check_branch
        %201 = sbr.rel (%p199) target = $region36
      $region35: #{clip_encoder_forward.1} parent=31 // pred_region
        %p202 = scmp.lt.s32.totalorder %s18, 0
        %s203 = scalar_select %p202, %s18, 0
        %p204 = scmp.lt.s32.totalorder %s19, 1
        %s205 = scalar_select %p204, %s19, 1
        %s206 = smul.addr %s203, 2
        %s207 = sadd.s32 %s205, %s206
        %s208 = smul.addr %s207, 4
        %s209 = scalar_lea.vmem %s1, %s208
      $region36: #{clip_encoder_forward.1} parent=31 // pred_fallthru
        _
    $region32: #{clip_encoder_forward.1} parent=5 // pred_fallthru
      _
  $region6: #{clip_encoder_forward.1} parent=0 // loop_footer
    %s11 = sadd.s32 1, %s7
  $region7: #{clip_encoder_forward.1} parent=0 // loop_footer_branch
    %6 = sbr.rel target = $region3
  $region8: #{clip_encoder_forward.1} parent=0 // loop_exit
    _

</llo_original>
